<compile_context>
chip_gen: v7x
topology: tpu7x:2x2x1
jax: 0.10.0
libtpu: 0.0.40
codegen_flags: <defaults>
</compile_context>

<pallas_src>
import math

import jax
import jax.numpy as jnp
from jax.experimental import pallas as pl
from jax.experimental.pallas import tpu as pltpu

_LANE = 128


def _dma_identity_kernel(x_hbm, o_hbm, sem):
    # Each grid step copies its leading-axis slice straight HBM -> HBM.
    i = pl.program_id(0)
    cp = pltpu.make_async_copy(x_hbm.at[i], o_hbm.at[i], sem)
    cp.start()
    cp.wait()


def _lane_dense_view(total: int):
    """Pick a (rows, lanes) 2D factorization; prefer even rows (v7x split)."""
    if total % (2 * _LANE) == 0:
        lanes = _LANE
        for cand in (2048, 1024, 512, 256):
            if total % (2 * cand) == 0:
                lanes = cand
                break
        return total // lanes, lanes
    if total % _LANE == 0:
        return total // _LANE, _LANE
    # Odd sizes: pure-DMA path has no (8,128) layout constraint; keep it 1D.
    return total, 1


@jax.jit
def basic_model_forward(x: jax.Array) -> jax.Array:
    """Pallas implementation of BasicModel.forward (abstract => identity)."""
    orig_shape = x.shape
    total = math.prod(orig_shape) if orig_shape else 1
    if total == 0:
        return x
    itemsize = jnp.dtype(x.dtype).itemsize

    rows, lanes = _lane_dense_view(total)
    # Split into 2 independent grid steps when possible so v7x's two
    # TensorCores can each drive half the DMA stream.
    n_steps = 2 if (rows >= 2 and rows % 2 == 0) else 1
    x_view = x.reshape(n_steps, rows // n_steps, lanes)

    y_view = pl.pallas_call(
        _dma_identity_kernel,
        out_shape=jax.ShapeDtypeStruct(x_view.shape, x.dtype),
        grid=(n_steps,),
        in_specs=[pl.BlockSpec(memory_space=pl.ANY)],
        out_specs=pl.BlockSpec(memory_space=pl.ANY),
        scratch_shapes=[pltpu.SemaphoreType.DMA(())],
        compiler_params=pltpu.CompilerParams(
            dimension_semantics=("parallel",),
        ),
        cost_estimate=pl.CostEstimate(
            flops=0,
            transcendentals=0,
            bytes_accessed=2 * total * itemsize,
        ),
    )(x_view)

    return y_view.reshape(orig_shape)


if __name__ == "__main__":
    key = jax.random.PRNGKey(0)
    # Small NCHW input consistent with a vision-style module:
    # batch=2, channels=4, spatial=16x16.
    x = jax.random.normal(key, (2, 4, 16, 16), dtype=jnp.float32)

    y = basic_model_forward(x)
    jax.block_until_ready(y)

    # Sanity check: abstract forward => identity semantics.
    assert y.shape == x.shape and y.dtype == x.dtype
    assert bool(jnp.allclose(y, x))

    print("KERNEL_OK")
</pallas_src>

<mosaic_0001>
module attributes {stable_mosaic.version = 11 : i64} {
  func.func @_dma_identity_kernel(%arg0: i32, %arg1: memref<2x1x1024xf32, #tpu.memory_space<any>>, %arg2: memref<2x1x1024xf32, #tpu.memory_space<any>>, %arg3: memref<!tpu.dma_semaphore, #tpu.memory_space<semaphore_mem>>) attributes {dimension_semantics = [#tpu.dimension_semantics<parallel>], iteration_bounds = array<i64: 2>, scalar_prefetch = 0 : i64, scratch_operands = 1 : i64, tpu.core_type = #tpu.core_type<tc>, window_params = [{}, {}]} {
    %c0_i32 = arith.constant 0 : i32
    %c0_i32_0 = arith.constant 0 : i32
    %0 = tpu.memref_slice %arg1[%arg0, %c0_i32, %c0_i32_0] : memref<2x1x1024xf32, #tpu.memory_space<any>> -> memref<1x1x1024xf32, #tpu.memory_space<any>>
    %1 = tpu.memref_squeeze %0 : memref<1x1x1024xf32, #tpu.memory_space<any>> -> memref<1x1024xf32, #tpu.memory_space<any>>
    %c0_i32_1 = arith.constant 0 : i32
    %c0_i32_2 = arith.constant 0 : i32
    %2 = tpu.memref_slice %arg2[%arg0, %c0_i32_1, %c0_i32_2] : memref<2x1x1024xf32, #tpu.memory_space<any>> -> memref<1x1x1024xf32, #tpu.memory_space<any>>
    %3 = tpu.memref_squeeze %2 : memref<1x1x1024xf32, #tpu.memory_space<any>> -> memref<1x1024xf32, #tpu.memory_space<any>>
    tpu.enqueue_dma source(%1 : memref<1x1024xf32, #tpu.memory_space<any>>) target(%3 : memref<1x1024xf32, #tpu.memory_space<any>>) target_semaphore(%arg3 : memref<!tpu.dma_semaphore, #tpu.memory_space<semaphore_mem>>)
    %c0_i32_3 = arith.constant 0 : i32
    %c0_i32_4 = arith.constant 0 : i32
    %4 = tpu.memref_slice %arg1[%arg0, %c0_i32_3, %c0_i32_4] : memref<2x1x1024xf32, #tpu.memory_space<any>> -> memref<1x1x1024xf32, #tpu.memory_space<any>>
    %5 = tpu.memref_squeeze %4 : memref<1x1x1024xf32, #tpu.memory_space<any>> -> memref<1x1024xf32, #tpu.memory_space<any>>
    %c0_i32_5 = arith.constant 0 : i32
    %c0_i32_6 = arith.constant 0 : i32
    %6 = tpu.memref_slice %arg2[%arg0, %c0_i32_5, %c0_i32_6] : memref<2x1x1024xf32, #tpu.memory_space<any>> -> memref<1x1x1024xf32, #tpu.memory_space<any>>
    %7 = tpu.memref_squeeze %6 : memref<1x1x1024xf32, #tpu.memory_space<any>> -> memref<1x1024xf32, #tpu.memory_space<any>>
    tpu.wait_dma2 semaphore(%arg3 : memref<!tpu.dma_semaphore, #tpu.memory_space<semaphore_mem>>) src(%5 : memref<1x1024xf32, #tpu.memory_space<any>>) dst(%7 : memref<1x1024xf32, #tpu.memory_space<any>>)
    return
  }
}

</mosaic_0001>

<llo_original>
// kernel: basic_model_forward.1
$region0: #{basic_model_forward.1}
  #allocation0 [shape = 'u32[]', space=smem, size = 0x4, offset = 0x4, fixed_abs, tag = 'smem constant byte address 0x4 - core index']
  #allocation1 [shape = 'u32[144,128]{1,0:T(1,128)}', space=vmem, size = 0x12000, scoped, tag = 'internal scratch']
  #allocation2 [shape = 's32[1]{0}', space=sflag, size = 0x4, scoped, tag = 'scratch operand']
  #allocation3 [shape = 's32[]', space=sflag, size = 0x4, offset = 0, fixed_abs, tag = 'sflag constant byte address 0x0 - dummy sync flag']
  %s0 = inlined_call_operand.vmem [shape: f32[2,1,1024], index: 0, kind: input, shape index: {}]
  %s1 = inlined_call_operand.vmem [shape: f32[2,1,1024], index: 1, kind: output, shape index: {}]
  %s2 = sld [smem:[#allocation0]]
  $region43: #{basic_model_forward.1} parent=0
    _
  %s4 = ssub.s32 1, %s2
  %s5 = scalar_select 0, %s4, %s2
  loop: start=0, step=1, limit=2
  $region2: #{basic_model_forward.1} parent=0 // loop_pre_header
    _
  $region3: #{basic_model_forward.1} parent=0 // loop_header
    %s7 = sphi 0, %s11
    %p8 = scmp.ge.s32.totalorder %s7, 2
  $region4: #{basic_model_forward.1} parent=0 // loop_header_branch
    %10 = sbr.rel (%p8) target = $region8
  $region5: #{basic_model_forward.1} parent=0 // loop_body
    %s12 = sadd.s32 %s7, 1
    %s13 = smul.u32 %s7, 8
    %s14 = scalar_lea.vmem %s0, %s13
    %s15 = scalar_lea.vmem %s1, %s13
    %p17 = scmp.lt.u32.totalorder 8, 8
    %p18 = pneg %p17
    // Predicated region
    $region9: #{basic_model_forward.1} parent=5 // pred_check
      _
    $region10: #{basic_model_forward.1} parent=5 // pred_check_branch
      %20 = sbr.rel (%p17) target = $region12
    $region11: #{basic_model_forward.1} parent=5 // pred_region
      %s35 = sand.u32 8, 7
      %p36 = scmp.eq.s32.totalorder %s35, 0
      // Predicated region
      $region24: #{basic_model_forward.1} parent=11 // pred_check
        %p37 = pneg %p36
      $region25: #{basic_model_forward.1} parent=11 // pred_check_branch
        %39 = sbr.rel (%p37) target = $region27
      $region26: #{basic_model_forward.1} parent=11 // pred_region
        loop: start=0, step=1, limit=1
        $region28: #{basic_model_forward.1} parent=26 // loop_pre_header
          _
        $region29: #{basic_model_forward.1} parent=26 // loop_header
          %s41 = sphi 0, %s45
          %p42 = scmp.ge.s32.totalorder %s41, 1
          %s46 = sphi %s14, %s14
          %s47 = sphi %s15, %s15
        $region30: #{basic_model_forward.1} parent=26 // loop_header_branch
          %44 = sbr.rel (%p42) target = $region34
        $region31: #{basic_model_forward.1} parent=26 // loop_body
          %v48 = vld [vmem:[%s46] sm:$0xff]
          %49 = vst [vmem:[%s47] sm:$0xff] %v48
        $region32: #{basic_model_forward.1} parent=26 // loop_footer
          %s45 = sadd.s32 1, %s41
        $region33: #{basic_model_forward.1} parent=26 // loop_footer_branch
          %40 = sbr.rel target = $region29
        $region34: #{basic_model_forward.1} parent=26 // loop_exit
          _
      $region27: #{basic_model_forward.1} parent=11 // pred_fallthru
        _
      %p50 = pneg %p36
      // Predicated region
      $region35: #{basic_model_forward.1} parent=11 // pred_check
        _
      $region36: #{basic_model_forward.1} parent=11 // pred_check_branch
        %52 = sbr.rel (%p36) target = $region38
      $region37: #{basic_model_forward.1} parent=11 // pred_region
        %s53 = sand.u32 8, 7
      $region38: #{basic_model_forward.1} parent=11 // pred_fallthru
        _
    $region12: #{basic_model_forward.1} parent=5 // pred_fallthru
      _
    // Predicated region
    $region13: #{basic_model_forward.1} parent=5 // pred_check
      %p21 = pneg %p17
    $region14: #{basic_model_forward.1} parent=5 // pred_check_branch
      %23 = sbr.rel (%p21) target = $region16
    $region15: #{basic_model_forward.1} parent=5 // pred_region
      %s24 = sshllo.u32 0, 8
      loop: start=0, step=1, limit=1
      $region17: #{basic_model_forward.1} parent=15 // loop_pre_header
        _
      $region18: #{basic_model_forward.1} parent=15 // loop_header
        %s26 = sphi 0, %s30
        %p27 = scmp.ge.s32.totalorder %s26, 1
        %s31 = sphi %s14, %s14
        %s32 = sphi %s15, %s15
      $region19: #{basic_model_forward.1} parent=15 // loop_header_branch
        %29 = sbr.rel (%p27) target = $region23
      $region20: #{basic_model_forward.1} parent=15 // loop_body
        %v33 = vld [vmem:[%s31] sm:%s24]
        %34 = vst [vmem:[%s32] sm:%s24] %v33
      $region21: #{basic_model_forward.1} parent=15 // loop_footer
        %s30 = sadd.s32 1, %s26
      $region22: #{basic_model_forward.1} parent=15 // loop_footer_branch
        %25 = sbr.rel target = $region18
      $region23: #{basic_model_forward.1} parent=15 // loop_exit
        _
    $region16: #{basic_model_forward.1} parent=5 // pred_fallthru
      _
    // Predicated region
    $region39: #{basic_model_forward.1} parent=5 // pred_check
      _
    $region40: #{basic_model_forward.1} parent=5 // pred_check_branch
      %56 = sbr.rel (0) target = $region42
    $region41: #{basic_model_forward.1} parent=5 // pred_region
      %57 = vsyncadd [#allocation2], 128
    $region42: #{basic_model_forward.1} parent=5 // pred_fallthru
      _
    %s58 = smul.u32 1, 8
    %s59 = sshll.u32 %s58, 4
    %60 = dma.done [#allocation2], %s59
  $region6: #{basic_model_forward.1} parent=0 // loop_footer
    %s11 = sadd.s32 1, %s7
  $region7: #{basic_model_forward.1} parent=0 // loop_footer_branch
    %6 = sbr.rel target = $region3
  $region8: #{basic_model_forward.1} parent=0 // loop_exit
    _
  %61 = vsyncmov [#allocation2]
  %s62 = vpop.sfrf %61
  %p63 = scmp.eq.s32.totalorder %s62, 0
  %p64 = pneg %p63
  %66 = shalt.err (%p64)

</llo_original>
